<compile_context>
chip_gen: v7x
topology: tpu7x:2x2x1
jax: 0.10.0
libtpu: 0.0.40
codegen_flags: <defaults>
</compile_context>

<pallas_src>
import functools

import jax
import jax.numpy as jnp
from jax.experimental import pallas as pl
from jax.experimental.pallas import tpu as pltpu

_LANES = 128
_SUBLANES = 8


def _disc_loss_kernel(x_ref, o_ref, acc_ref, *, ground_truth: bool, n_valid: int):
    """Per-block: acc += sublane-folded partial sum; finalize on last block."""
    i = pl.program_id(1)

    @pl.when(i == 0)
    def _():
        acc_ref[...] = jnp.zeros_like(acc_ref)

    x = x_ref[...].astype(jnp.float32)
    eps = jnp.float32(1e-8)
    if ground_truth:  # static Python bool (mirrors PyTorch `if ground_truth`)
        v = jnp.log(x + eps)
    else:
        v = jnp.log(jnp.float32(1.0) - x + eps)

    rows = v.shape[0]  # static block row count, multiple of 8
    # Sublane-fold: (rows, 128) -> (rows//8, 8, 128), sum over the leading dim.
    # Pure vreg-to-vreg VALU adds; the EUP log dominates, so this is hidden.
    acc_ref[...] += jnp.sum(v.reshape(rows // _SUBLANES, _SUBLANES, _LANES), axis=0)

    @pl.when(i == pl.num_programs(1) - 1)
    def _():
        # Single cross-lane reduction + negate + divide, once per slab.
        o_ref[0, 0] = -jnp.sum(acc_ref[...]) / jnp.float32(n_valid)


def discriminator_loss(disc_output: jax.Array, ground_truth, *, block_rows: int = 1024) -> jax.Array:
    """JAX/Pallas equivalent of discriminator_loss.forward. Returns a scalar f32."""
    ground_truth = bool(ground_truth)
    n_valid = int(disc_output.size)
    flat = jnp.reshape(disc_output, (-1,))  # keep original dtype; cast in-kernel

    # --- tiling geometry (all static Python ints) ---
    rows = pl.cdiv(n_valid, _LANES)
    rows8 = pl.cdiv(rows, _SUBLANES) * _SUBLANES
    block_rows = max(_SUBLANES, (block_rows // _SUBLANES) * _SUBLANES)
    R = min(block_rows, rows8)
    blocks_total = pl.cdiv(rows8, R)
    num_slabs = 2 if blocks_total >= 2 else 1       # 2 partials -> both TCs on v7x
    blocks_per_slab = pl.cdiv(blocks_total, num_slabs)
    padded_rows = num_slabs * blocks_per_slab * R
    padded_n = padded_rows * _LANES

    # --- neutral tail padding (no per-element mask needed in the kernel) ---
    # Relies on f32 rounding: 1.0 +/- 1e-8 == 1.0 exactly, so log-term == 0.
    if padded_n != n_valid:
        pad_val = 1.0 if ground_truth else 0.0
        flat = jnp.pad(flat, (0, padded_n - n_valid), constant_values=pad_val)
    x2d = jnp.reshape(flat, (padded_rows, _LANES))

    kernel = functools.partial(
        _disc_loss_kernel, ground_truth=ground_truth, n_valid=n_valid
    )

    def in_index_map(c, i):
        return (c * blocks_per_slab + i, 0)

    cost = pl.CostEstimate(
        flops=2 * n_valid,
        transcendentals=n_valid,
        bytes_accessed=padded_n * x2d.dtype.itemsize + num_slabs * 4,
    )

    partials = pl.pallas_call(
        kernel,
        out_shape=jax.ShapeDtypeStruct((num_slabs, 1), jnp.float32),
        grid=(num_slabs, blocks_per_slab),
        in_specs=[pl.BlockSpec((R, _LANES), in_index_map)],
        out_specs=pl.BlockSpec((1, 1), lambda c, i: (c, 0), memory_space=pltpu.SMEM),
        scratch_shapes=[pltpu.VMEM((_SUBLANES, _LANES), jnp.float32)],
        compiler_params=pltpu.CompilerParams(
            dimension_semantics=("parallel", "arbitrary")
        ),
        cost_estimate=cost,
    )(x2d)

    # Each slab already produced -sum_slab / n_valid; total loss is their sum.
    return jnp.sum(partials)


def _reference(disc_output: jax.Array, ground_truth: bool) -> jax.Array:
    eps = 1e-8
    if ground_truth:
        return -1.0 * jnp.mean(jnp.log(disc_output + eps))
    return -1.0 * jnp.mean(jnp.log(1.0 - disc_output + eps))


if __name__ == "__main__":
    key = jax.random.PRNGKey(0)
    ok = True

    # Discriminator outputs: probabilities in (0, 1).
    x_main = jax.random.uniform(
        key, (2, 4, 16, 16), dtype=jnp.float32, minval=0.05, maxval=0.95
    )
    # Small non-128-aligned shape to exercise the neutral-pad tail path.
    x_ragged = jax.random.uniform(
        jax.random.PRNGKey(1), (2, 3, 5, 7), dtype=jnp.float32, minval=0.05, maxval=0.95
    )
    # bf16 input exercises the in-kernel cast path (half the HBM bytes).
    x_bf16 = x_main.astype(jnp.bfloat16)

    cases = [
        ("main", x_main, dict(block_rows=1024)),      # single-block path
        ("multiblock", x_main, dict(block_rows=8)),   # multi-block + 2-slab path
        ("ragged", x_ragged, dict(block_rows=1024)),  # padded-tail path
        ("bf16", x_bf16, dict(block_rows=1024)),      # narrow-dtype streaming path
    ]
    for name, x, kwargs in cases:
        for gt in (True, False):
            got = jax.block_until_ready(discriminator_loss(x, gt, **kwargs))
            want = jax.block_until_ready(_reference(x.astype(jnp.float32), gt))
            tol = 1e-2 if x.dtype == jnp.bfloat16 else 1e-5
            if not jnp.allclose(got, want, rtol=tol, atol=tol):
                ok = False
                print(f"MISMATCH case={name} gt={gt}: got={got} want={want}")

    if ok:
        print("KERNEL_OK")
</pallas_src>

<mosaic_0001>
module attributes {stable_mosaic.version = 11 : i64} {
  func.func @_disc_loss_kernel(%arg0: i32, %arg1: i32, %arg2: memref<16x128xf32, #tpu.memory_space<vmem>>, %arg3: memref<1x1xf32, #tpu.memory_space<smem>>, %arg4: memref<8x128xf32, #tpu.memory_space<vmem>>) attributes {dimension_semantics = [#tpu.dimension_semantics<parallel>, #tpu.dimension_semantics<arbitrary>], iteration_bounds = array<i64: 1, 1>, scalar_prefetch = 0 : i64, scratch_operands = 1 : i64, tpu.core_type = #tpu.core_type<tc>, window_params = [{transform_indices = @transform_0, window_bounds = array<i64: 16, 128>}, {transform_indices = @transform_1, window_bounds = array<i64: 1, 1>}]} {
    %c0_i32 = arith.constant 0 : i32
    %0 = arith.cmpi eq, %arg1, %c0_i32 : i32
    %1 = arith.extui %0 : i1 to i32
    %c0_i32_0 = arith.constant 0 : i32
    %2 = arith.cmpi ne, %1, %c0_i32_0 : i32
    scf.if %2 {
      %cst_9 = arith.constant 0.000000e+00 : f32
      %15 = vector.broadcast %cst_9 : f32 to vector<8x128xf32>
      %c0_10 = arith.constant 0 : index
      %c0_11 = arith.constant 0 : index
      %16 = vector.load %arg4[%c0_10, %c0_11] : memref<8x128xf32, #tpu.memory_space<vmem>>, vector<8x128xf32>
      tpu.vector_store %arg4[%c0_10, %c0_11], %15 {strides = array<i32>} : memref<8x128xf32, #tpu.memory_space<vmem>>, vector<8x128xf32>,
    } else {
    }
    %c0 = arith.constant 0 : index
    %c0_1 = arith.constant 0 : index
    %3 = vector.load %arg2[%c0, %c0_1] : memref<16x128xf32, #tpu.memory_space<vmem>>, vector<16x128xf32>
    %cst = arith.constant 9.99999993E-9 : f32
    %4 = vector.broadcast %cst : f32 to vector<16x128xf32>
    %5 = arith.addf %3, %4 : vector<16x128xf32>
    %6 = math.log %5 : vector<16x128xf32>
    %c0_2 = arith.constant 0 : index
    %c0_3 = arith.constant 0 : index
    %7 = vector.load %arg4[%c0_2, %c0_3] : memref<8x128xf32, #tpu.memory_space<vmem>>, vector<8x128xf32>
    %8 = vector.shape_cast %6 : vector<16x128xf32> to vector<2x8x128xf32>
    %cst_4 = arith.constant dense<0.000000e+00> : vector<8x128xf32>
    %9 = vector.multi_reduction <add>, %8, %cst_4 [0] : vector<2x8x128xf32> to vector<8x128xf32>
    %10 = arith.addf %7, %9 : vector<8x128xf32>
    %c0_5 = arith.constant 0 : index
    %c0_6 = arith.constant 0 : index
    %11 = vector.load %arg4[%c0_5, %c0_6] : memref<8x128xf32, #tpu.memory_space<vmem>>, vector<8x128xf32>
    tpu.vector_store %arg4[%c0_5, %c0_6], %10 {strides = array<i32>} : memref<8x128xf32, #tpu.memory_space<vmem>>, vector<8x128xf32>,
    %c0_i32_7 = arith.constant 0 : i32
    %12 = arith.cmpi eq, %arg1, %c0_i32_7 : i32
    %13 = arith.extui %12 : i1 to i32
    %c0_i32_8 = arith.constant 0 : i32
    %14 = arith.cmpi ne, %13, %c0_i32_8 : i32
    scf.if %14 {
      %c0_9 = arith.constant 0 : index
      %c0_10 = arith.constant 0 : index
      %15 = vector.load %arg4[%c0_9, %c0_10] : memref<8x128xf32, #tpu.memory_space<vmem>>, vector<8x128xf32>
      %16 = vector.shape_cast %15 : vector<8x128xf32> to vector<1x8x128xf32>
      %cst_11 = arith.constant dense<0.000000e+00> : vector<1xf32>
      %17 = vector.multi_reduction <add>, %16, %cst_11 [1, 2] : vector<1x8x128xf32> to vector<1xf32>
      %18 = vector.shape_cast %17 : vector<1xf32> to vector<1x1x1xf32>
      %19 = vector.extract %18[0, 0, 0] : f32 from vector<1x1x1xf32>
      %cst_12 = arith.constant 0.000000e+00 : f32
      %20 = arith.subf %cst_12, %19 : f32
      %cst_13 = arith.constant 2.048000e+03 : f32
      %21 = arith.divf %20, %cst_13 : f32
      %c0_14 = arith.constant 0 : index
      %c0_15 = arith.constant 0 : index
      %22 = memref.load %arg3[%c0_14, %c0_15] : memref<1x1xf32, #tpu.memory_space<smem>>
      memref.store %21, %arg3[%c0_14, %c0_15] : memref<1x1xf32, #tpu.memory_space<smem>>
    } else {
    }
    return
  }
  func.func @transform_0(%arg0: i32, %arg1: i32) -> (i32, i32) {
    %c1_i32 = arith.constant 1 : i32
    %0 = arith.muli %arg0, %c1_i32 : i32
    %1 = arith.addi %0, %arg1 : i32
    %c0_i32 = arith.constant 0 : i32
    %c0_i32_0 = arith.constant 0 : i32
    return %1, %c0_i32 : i32, i32
  }
  func.func @transform_1(%arg0: i32, %arg1: i32) -> (i32, i32) {
    %c0_i32 = arith.constant 0 : i32
    %c0_i32_0 = arith.constant 0 : i32
    return %arg0, %c0_i32 : i32, i32
  }
}

</mosaic_0001>

<llo_original>
// kernel: tpu_custom_call.1
$region0: #{tpu_custom_call.1}
  #allocation0 [shape = 'u32[]', space=smem, size = 0x4, offset = 0x4, fixed_abs, tag = 'smem constant byte address 0x4 - core index']
  #allocation1 [shape = 'u32[144,128]{1,0:T(1,128)}', space=vmem, size = 0x12000, scoped, tag = 'internal scratch']
  #allocation2 [shape = 'f32[8,128]{1,0:T(8,128)}', space=vmem, size = 0x1000, scoped, tag = 'scratch operand']
  %s0 = inlined_call_operand.hbm [shape: f32[16,128], index: 0, kind: input, shape index: {}]
  %s1 = inlined_call_operand.hbm [shape: f32[1,1], index: 1, kind: output, shape index: {}]
  %s2 = sld [smem:[#allocation0]]
  $region26: #{tpu_custom_call.1} parent=0
    _
  %s4 = ssub.s32 1, %s2
  %s5 = scalar_select 0, %s4, %s2
  $region1: #{tpu_custom_call.1} parent=0
    #allocation3 [shape = 'u8[8192]{0}', space=vmem, size = 0x2000, scoped, tag = 'input window, operand 0, single buffered']
    #allocation4 [shape = 's32[1]{0}', space=sflag, size = 0x4, scoped, tag = 'scoped memory for tpu_custom_call.1']
    #allocation5 [shape = 's32[1]{0}', space=sflag, size = 0x4, scoped, tag = 'scoped memory for tpu_custom_call.1']
    #allocation6 [shape = 'u8[512]{0}', space=smem, size = 0x200, scoped, tag = 'output window, operand 0, single buffered']
    %6 = vsyncpa [#allocation4], 0
    %7 = vsyncpa [#allocation5], 0
    // Predicated region
    $region2: #{tpu_custom_call.1} parent=1 // pred_check
      _
    $region3: #{tpu_custom_call.1} parent=1 // pred_check_branch
      %9 = sbr.rel (0) target = $region5
    $region4: #{tpu_custom_call.1} parent=1 // pred_region
      %s10 = sadd.s32 0, 0
      %s11 = smul.u32 2, %s10
      %s13 = ssub.s32 256, 256
      %14 = vsyncadd [#allocation4], %s13
      %s15 = smul.addr %s11, 128
      %s16 = scalar_lea.hbm %s0, %s15
      %s17 = sshll.u32 [#allocation3], 4
      %s18 = int_to_ptr.vmem [resolvable:$true] %s17
      %23 = dma.hbm_to_vmem [thread:$0]  %s16, 256, %s18, [#allocation4], 128, 128, 8
    $region5: #{tpu_custom_call.1} parent=1 // pred_fallthru
      _
    // Predicated region
    $region6: #{tpu_custom_call.1} parent=1 // pred_check
      _
    $region7: #{tpu_custom_call.1} parent=1 // pred_check_branch
      %25 = sbr.rel (0) target = $region9
    $region8: #{tpu_custom_call.1} parent=1 // pred_region
      %26 = dma.done [#allocation4], 256
    $region9: #{tpu_custom_call.1} parent=1 // pred_fallthru
      _
    %s27 = sadd.s32 0, 0
    %s28 = smul.u32 2, %s27
    %p29 = scmp.eq.s32.totalorder 0, 0
    // Predicated region
    $region10: #{tpu_custom_call.1} parent=1 // pred_check
      %p30 = pneg %p29
    $region11: #{tpu_custom_call.1} parent=1 // pred_check_branch
      %32 = sbr.rel (%p30) target = $region13
    $region12: #{tpu_custom_call.1} parent=1 // pred_region
      %33 = vst [vmem:[#allocation2] sm:$0xff] 0.0
    $region13: #{tpu_custom_call.1} parent=1 // pred_fallthru
      _
    %v34 = vld [vmem:[#allocation3] sm:$0xff]
    %v35 = vld [vmem:[#allocation3 + $0x8] sm:$0xff]
    %v36 = vadd.f32 %v34, 1e-08
    %v37 = vadd.f32 %v35, 1e-08
    %v38 = vlog2.pop %v36
    %v39 = vmul.f32 %v38, 0.6931472
    %v40 = vlog2.pop %v37
    %v41 = vmul.f32 %v40, 0.6931472
    %v42 = vld [vmem:[#allocation2] sm:$0xff]
    %v43 = vadd.f32 %v39, %v41
    %v44 = vadd.f32 %v42, %v43
    %45 = vst [vmem:[#allocation2] sm:$0xff] %v44
    // Predicated region
    $region14: #{tpu_custom_call.1} parent=1 // pred_check
      %p46 = pneg %p29
    $region15: #{tpu_custom_call.1} parent=1 // pred_check_branch
      %48 = sbr.rel (%p46) target = $region17
    $region16: #{tpu_custom_call.1} parent=1 // pred_region
      %v49 = vld [vmem:[#allocation2] sm:$0xff]
      %50 = vadd.xlane.f32.xlu0 %v49
      %v51 = vpop.xlane.xlu0 %50
      %v52 = vrot.slane %v51, 4
      %v53 = vadd.f32 %v51, %v52
      %v54 = vrot.slane %v53, 2
      %v55 = vadd.f32 %v53, %v54
      %v56 = vrot.slane %v55, 1
      %v57 = vadd.f32 %v55, %v56
      %s58 = vtos %v57
      %s59 = ssub.f32 0.0, %s58
      %v60 = vrcp.pop 2048.0
      %s61 = vtos %v60
      %s62 = smul.f32 %s59, %s61
      %s63 = scalar_lea.smem [#allocation6], 0
      %64 = sst [smem:[%s63]] %s62
    $region17: #{tpu_custom_call.1} parent=1 // pred_fallthru
      _
    // Predicated region
    $region18: #{tpu_custom_call.1} parent=1 // pred_check
      _
    $region19: #{tpu_custom_call.1} parent=1 // pred_check_branch
      %66 = sbr.rel (0) target = $region21
    $region20: #{tpu_custom_call.1} parent=1 // pred_region
      %s68 = ssub.s32 16, 16
      %69 = vsyncadd [#allocation5], %s68
      %72 = dma.smem_to_hbm [#allocation6], 16, %s1, [#allocation5]
    $region21: #{tpu_custom_call.1} parent=1 // pred_fallthru
      _
    // Predicated region
    $region22: #{tpu_custom_call.1} parent=1 // pred_check
      _
    $region23: #{tpu_custom_call.1} parent=1 // pred_check_branch
      %74 = sbr.rel (0) target = $region25
    $region24: #{tpu_custom_call.1} parent=1 // pred_region
      %75 = dma.done [#allocation5], 16
    $region25: #{tpu_custom_call.1} parent=1 // pred_fallthru
      _
    %76 = sfence
    %77 = vsyncpa [#allocation4], 1
    %78 = vsyncpa [#allocation5], 1

</llo_original>
